<compile_context>
chip_gen: v7x
topology: tpu7x:2x2x1
jax: 0.10.0
libtpu: 0.0.40
codegen_flags: <defaults>
</compile_context>

<pallas_src>
from functools import partial

import jax
import jax.numpy as jnp
from jax.experimental import pallas as pl
from jax.experimental.pallas import tpu as pltpu


# ----------------------------------------------------------------------------
# Pallas kernel: whole ConvNet forward for one lane-dense block of Bb batches.
# ----------------------------------------------------------------------------
def convnet_kernel(x_ref, w_ref, o_ref, *, seq_len):
    # x_ref: (Cin, N)   channel-major input, N = Bb * T lanes (batch x time)
    # w_ref: (5D, Kpad) packed weights (biases folded as last used column)
    # o_ref: (D, N)     channel-major output slab
    Cin, N = x_ref.shape
    D = o_ref.shape[0]
    K1 = 3 * Cin + 1          # conv1 / residual contraction width (taps + bias row)
    K2 = 3 * D + 1            # conv2 / block2 contraction width

    x = x_ref[...].astype(jnp.float32)

    # Time position of every lane: zero the conv taps that would otherwise read
    # across a batch-element boundary (reproduces 'same' pad=1 convolution).
    t_pos = jax.lax.broadcasted_iota(jnp.int32, (1, N), 1) % seq_len
    is_first = t_pos == 0
    is_last = t_pos == seq_len - 1
    ones_row = jnp.ones((1, N), jnp.float32)   # hoisted: feeds the bias column

    def conv(h, w):
        # (Dout, 3C+1) @ (3C+1, N): three taps + bias in a single MXU push.
        # +/-1 shifts on the XLU via roll; boundary lanes masked to zero.
        prev = jnp.where(is_first, 0.0, pltpu.roll(h, shift=1, axis=1))
        nxt = jnp.where(is_last, 0.0, pltpu.roll(h, shift=N - 1, axis=1))
        xcat = jnp.concatenate([prev, h, nxt, ones_row], axis=0).astype(w.dtype)
        return jnp.dot(w, xcat, preferred_element_type=jnp.float32)

    # Static slices into the single packed weight buffer (row offsets are
    # multiples of 8 sublanes).
    w1 = w_ref[0:2 * D, 0:K1]        # block1 conv1+bn1 fused with 1x1 residual
    w12 = w_ref[2 * D:3 * D, 0:K2]   # block1 conv2+bn2
    w21 = w_ref[3 * D:4 * D, 0:K2]   # block2 conv1+bn1
    w22 = w_ref[4 * D:5 * D, 0:K2]   # block2 conv2+bn2

    # ---- ResBlock 1 (Cin -> D): conv path (rows :D) and residual (rows D:)
    # come out of the same matmul.
    y = conv(x, w1)                               # (2D, N)
    h = jnp.maximum(y[:D, :], 0.0)
    res = y[D:, :]
    h = jnp.maximum(conv(h, w12) + res, 0.0)

    # ---- ResBlock 2 (D -> D, identity residual) ----
    h2 = jnp.maximum(conv(h, w21), 0.0)
    out = jnp.maximum(conv(h2, w22) + h, 0.0)

    # One unmasked 128-lane store.
    o_ref[...] = out.astype(o_ref.dtype)


# ----------------------------------------------------------------------------
# Wrapper: NCW in, NCW out.  Layout plumbing (transpose/reshape of a few KB)
# stays in XLA; the kernel only sees lane-dense slabs.
# ----------------------------------------------------------------------------
def convnet_forward(x_nct, wpack, *, batch_block=8, matmul_dtype=jnp.float32):
    """x_nct: (B, Cin, T) float32 (PyTorch NCW). wpack: packed weights (5D, Kpad).
    Returns (B, D, T).

    batch_block: 8 keeps an even 'parallel' grid for B=16 (v7x: both TCs busy);
    use 16 on single-core v5e/v6e to collapse to one 256-lane step.
    """
    B, Cin, T = x_nct.shape
    D = wpack.shape[0] // 5

    Bb = batch_block
    # Pad B up to a multiple of Bb so every step is lane-dense (no degenerate
    # odd divisors -> masked partial stores).
    B_pad = -(-B // Bb) * Bb
    if B_pad != B:
        x_nct = jnp.pad(x_nct, ((0, B_pad - B), (0, 0), (0, 0)))

    # NCW -> channel-major (Cin, B*T).
    x_flat = jnp.transpose(x_nct, (1, 0, 2)).reshape(Cin, B_pad * T)

    # Only the matmul operand is optionally cast; accumulation/elementwise stay f32.
    w = wpack if matmul_dtype == jnp.float32 else wpack.astype(matmul_dtype)

    grid = (B_pad // Bb,)
    out_flat = pl.pallas_call(
        partial(convnet_kernel, seq_len=T),
        out_shape=jax.ShapeDtypeStruct((D, B_pad * T), jnp.float32),
        grid=grid,
        in_specs=[
            pl.BlockSpec((Cin, Bb * T), lambda i: (0, i)),   # lane-dense input tile
            pl.BlockSpec(w.shape, lambda i: (0, 0)),          # weights: fetched once
        ],
        out_specs=pl.BlockSpec((D, Bb * T), lambda i: (0, i)),  # lane-dense output
        compiler_params=pltpu.CompilerParams(
            dimension_semantics=("parallel",),       # even extent -> both v7x TCs
            vmem_limit_bytes=32 * 1024 * 1024,       # explicit budget (v7x-safe)
        ),
    )(x_flat, w)

    out = jnp.transpose(out_flat.reshape(D, B_pad, T), (1, 0, 2))
    return out[:B]


# ----------------------------------------------------------------------------
# Parameter construction (deterministic, synthetic) + BN folding + packing.
# ----------------------------------------------------------------------------
EPS = 1e-5


def make_raw_params(key, in_channels, d_model, kernel_size=3):
    ks = list(jax.random.split(key, 32))
    nxt = iter(ks).__next__

    def conv(cout, cin, k):
        w = jax.random.normal(nxt(), (cout, cin, k), jnp.float32) * 0.2
        b = jax.random.normal(nxt(), (cout,), jnp.float32) * 0.1
        return w, b

    def bn(c):
        gamma = 1.0 + 0.1 * jax.random.normal(nxt(), (c,), jnp.float32)
        beta = 0.1 * jax.random.normal(nxt(), (c,), jnp.float32)
        mean = 0.1 * jax.random.normal(nxt(), (c,), jnp.float32)
        var = jnp.abs(jax.random.normal(nxt(), (c,), jnp.float32)) + 0.5
        return gamma, beta, mean, var

    raw = {}
    raw["b1_conv1"] = conv(d_model, in_channels, kernel_size)
    raw["b1_bn1"] = bn(d_model)
    raw["b1_conv2"] = conv(d_model, d_model, kernel_size)
    raw["b1_bn2"] = bn(d_model)
    raw["b1_convr"] = conv(d_model, in_channels, 1)
    raw["b1_bnr"] = bn(d_model)
    raw["b2_conv1"] = conv(d_model, d_model, kernel_size)
    raw["b2_bn1"] = bn(d_model)
    raw["b2_conv2"] = conv(d_model, d_model, kernel_size)
    raw["b2_bn2"] = bn(d_model)
    return raw


def fold_conv_bn(conv, bn):
    """Fold eval-mode BN into conv. Returns (W (Cout,Cin,K), bias (Cout,))."""
    w, b = conv
    gamma, beta, mean, var = bn
    scale = gamma / jnp.sqrt(var + EPS)
    return w * scale[:, None, None], (b - mean) * scale + beta


def make_kernel_params(raw):
    """Fold BN, pack taps+bias along the contraction axis, and concatenate all
    four conv matrices into a single (5D, Kpad) buffer (Kpad = lane multiple)."""
    def pack_wb(w_f, b):
        # (Dout, C, 3), (Dout,) -> (Dout, 3C+1); column k*C+c multiplies x[c, t+k-1],
        # last column multiplies the constant ones row (bias).
        d = w_f.shape[0]
        w2 = jnp.transpose(w_f, (0, 2, 1)).reshape(d, -1)
        return jnp.concatenate([w2, b[:, None]], axis=1)

    w11, b11 = fold_conv_bn(raw["b1_conv1"], raw["b1_bn1"])   # (D, Cin, 3), (D,)
    w12, b12 = fold_conv_bn(raw["b1_conv2"], raw["b1_bn2"])
    wr, br = fold_conv_bn(raw["b1_convr"], raw["b1_bnr"])     # (D, Cin, 1), (D,)
    w21, b21 = fold_conv_bn(raw["b2_conv1"], raw["b2_bn1"])
    w22, b22 = fold_conv_bn(raw["b2_conv2"], raw["b2_bn2"])

    D, Cin = w11.shape[0], w11.shape[1]
    K2 = 3 * D + 1
    Kpad = -(-K2 // 128) * 128

    # 1x1 residual conv occupies only the centre-tap columns; bias in last column.
    zc = jnp.zeros((D, Cin), jnp.float32)
    w_res = jnp.concatenate([zc, wr[:, :, 0], zc, br[:, None]], axis=1)  # (D, 3Cin+1)

    def pad_cols(m):
        return jnp.pad(m, ((0, 0), (0, Kpad - m.shape[1])))

    packed = jnp.concatenate(
        [
            pad_cols(jnp.concatenate([pack_wb(w11, b11), w_res], axis=0)),  # rows 0:2D
            pad_cols(pack_wb(w12, b12)),                                    # 2D:3D
            pad_cols(pack_wb(w21, b21)),                                    # 3D:4D
            pad_cols(pack_wb(w22, b22)),                                    # 4D:5D
        ],
        axis=0,
    )
    return packed                                                           # (5D, Kpad)


# ----------------------------------------------------------------------------
# Pure-JAX reference (uses the unfolded params) for verification.
# ----------------------------------------------------------------------------
def conv1d_ref(x, w, b, padding):
    y = jax.lax.conv_general_dilated(
        x, w, window_strides=(1,), padding=[(padding, padding)],
        dimension_numbers=("NCH", "OIH", "NCH"),
    )
    return y + b[None, :, None]


def bn_ref(x, bn):
    gamma, beta, mean, var = bn
    inv = gamma / jnp.sqrt(var + EPS)
    return (x - mean[None, :, None]) * inv[None, :, None] + beta[None, :, None]


def convnet_ref(x, raw):
    h = jax.nn.relu(bn_ref(conv1d_ref(x, *raw["b1_conv1"], 1), raw["b1_bn1"]))
    h = bn_ref(conv1d_ref(h, *raw["b1_conv2"], 1), raw["b1_bn2"])
    res = bn_ref(conv1d_ref(x, *raw["b1_convr"], 0), raw["b1_bnr"])
    h = jax.nn.relu(h + res)
    h2 = jax.nn.relu(bn_ref(conv1d_ref(h, *raw["b2_conv1"], 1), raw["b2_bn1"]))
    h2 = bn_ref(conv1d_ref(h2, *raw["b2_conv2"], 1), raw["b2_bn2"])
    return jax.nn.relu(h2 + h)


# ----------------------------------------------------------------------------
if __name__ == "__main__":
    # Bb=8, T=16 -> 128 lanes per grid step; grid=(2,) parallel (v7x: both TCs).
    B, Cin, D, T = 16, 4, 32, 16

    key = jax.random.PRNGKey(0)
    k_x, k_p = jax.random.split(key)
    x = jax.random.normal(k_x, (B, Cin, T), jnp.float32)

    raw = make_raw_params(k_p, Cin, D, kernel_size=3)
    wpack = make_kernel_params(raw)

    out = jax.block_until_ready(convnet_forward(x, wpack, batch_block=8))

    ref = convnet_ref(x, raw)
    assert out.shape == (B, D, T), out.shape
    max_err = float(jnp.max(jnp.abs(out - ref)))
    assert jnp.allclose(out, ref, atol=1e-4, rtol=1e-4), max_err

    print("KERNEL_OK")
</pallas_src>

<mosaic_0001>
module attributes {stable_mosaic.version = 11 : i64} {
  func.func @convnet_kernel(%arg0: i32, %arg1: memref<4x128xf32, #tpu.memory_space<vmem>>, %arg2: memref<160x128xf32, #tpu.memory_space<vmem>>, %arg3: memref<32x128xf32, #tpu.memory_space<vmem>>) attributes {dimension_semantics = [#tpu.dimension_semantics<parallel>], iteration_bounds = array<i64: 2>, scalar_prefetch = 0 : i64, scratch_operands = 0 : i64, tpu.core_type = #tpu.core_type<tc>, window_params = [{transform_indices = @transform_0, window_bounds = array<i64: 4, 128>}, {pipeline_mode = #tpu.pipeline_mode<synchronous>, transform_indices = @transform_1, window_bounds = array<i64: 160, 128>}, {transform_indices = @transform_2, window_bounds = array<i64: 32, 128>}]} {
    %c0 = arith.constant 0 : index
    %c0_0 = arith.constant 0 : index
    %0 = vector.load %arg1[%c0, %c0_0] : memref<4x128xf32, #tpu.memory_space<vmem>>, vector<4x128xf32>
    %1 = tpu.iota {dimensions = array<i32: 1>} : vector<1x128xi32>
    %c16_i32 = arith.constant 16 : i32
    %c0_i32 = arith.constant 0 : i32
    %2 = arith.cmpi eq, %c16_i32, %c0_i32 : i32
    %c1_i32 = arith.constant 1 : i32
    %3 = arith.select %2, %c1_i32, %c16_i32 : i32
    %4 = vector.broadcast %3 : i32 to vector<1x128xi32>
    %5 = arith.remsi %1, %4 : vector<1x128xi32>
    %c0_i32_1 = arith.constant 0 : i32
    %6 = vector.broadcast %c0_i32_1 : i32 to vector<1x128xi32>
    %7 = arith.cmpi ne, %5, %6 : vector<1x128xi32>
    %c0_i32_2 = arith.constant 0 : i32
    %8 = vector.broadcast %c0_i32_2 : i32 to vector<1x128xi32>
    %9 = arith.cmpi slt, %5, %8 : vector<1x128xi32>
    %c0_i32_3 = arith.constant 0 : i32
    %10 = arith.cmpi slt, %3, %c0_i32_3 : i32
    %11 = vector.broadcast %10 : i1 to vector<1x128xi1>
    %12 = vector.broadcast %11 : vector<1x128xi1> to vector<1x128xi1>
    %13 = arith.xori %9, %12 : vector<1x128xi1>
    %14 = arith.andi %13, %7 : vector<1x128xi1>
    %15 = vector.broadcast %3 : i32 to vector<1x128xi32>
    %16 = arith.addi %5, %15 : vector<1x128xi32>
    %17 = arith.select %14, %16, %5 : vector<1x128xi1>, vector<1x128xi32>
    %c0_i32_4 = arith.constant 0 : i32
    %18 = vector.broadcast %c0_i32_4 : i32 to vector<1x128xi32>
    %19 = arith.cmpi eq, %17, %18 : vector<1x128xi32>
    %c15_i32 = arith.constant 15 : i32
    %20 = vector.broadcast %c15_i32 : i32 to vector<1x128xi32>
    %21 = arith.cmpi eq, %17, %20 : vector<1x128xi32>
    %cst = arith.constant 1.000000e+00 : f32
    %22 = vector.broadcast %cst : f32 to vector<1x128xf32>
    %c0_5 = arith.constant 0 : index
    %c0_6 = arith.constant 0 : index
    %23 = vector.load %arg2[%c0_5, %c0_6] : memref<160x128xf32, #tpu.memory_space<vmem>>, vector<64x13xf32>
    %c64 = arith.constant 64 : index
    %c0_7 = arith.constant 0 : index
    %24 = vector.load %arg2[%c64, %c0_7] : memref<160x128xf32, #tpu.memory_space<vmem>>, vector<32x97xf32>
    %c96 = arith.constant 96 : index
    %c0_8 = arith.constant 0 : index
    %25 = vector.load %arg2[%c96, %c0_8] : memref<160x128xf32, #tpu.memory_space<vmem>>, vector<32x97xf32>
    %c128 = arith.constant 128 : index
    %c0_9 = arith.constant 0 : index
    %26 = vector.load %arg2[%c128, %c0_9] : memref<160x128xf32, #tpu.memory_space<vmem>>, vector<32x97xf32>
    %c1_i32_10 = arith.constant 1 : i32
    %27 = tpu.dynamic_rotate %0 by %c1_i32_10 dim 1 : vector<4x128xf32>, i32 -> vector<4x128xf32>
    %cst_11 = arith.constant 0.000000e+00 : f32
    %28 = vector.shape_cast %19 : vector<1x128xi1> to vector<1x128xi1>
    %29 = vector.broadcast %28 : vector<1x128xi1> to vector<4x128xi1>
    %30 = vector.broadcast %cst_11 : f32 to vector<4x128xf32>
    %31 = arith.select %29, %30, %27 : vector<4x128xi1>, vector<4x128xf32>
    %c127_i32 = arith.constant 127 : i32
    %32 = tpu.dynamic_rotate %0 by %c127_i32 dim 1 : vector<4x128xf32>, i32 -> vector<4x128xf32>
    %cst_12 = arith.constant 0.000000e+00 : f32
    %33 = vector.shape_cast %21 : vector<1x128xi1> to vector<1x128xi1>
    %34 = vector.broadcast %33 : vector<1x128xi1> to vector<4x128xi1>
    %35 = vector.broadcast %cst_12 : f32 to vector<4x128xf32>
    %36 = arith.select %34, %35, %32 : vector<4x128xi1>, vector<4x128xf32>
    %37 = tpu.concatenate %31, %0, %36, %22 in 0 : vector<4x128xf32>, vector<4x128xf32>, vector<4x128xf32>, vector<1x128xf32> -> vector<13x128xf32>
    %cst_13 = arith.constant dense<0.000000e+00> : vector<64x128xf32>
    %38 = tpu.matmul %23, %37, %cst_13 {dimension_numbers = #tpu.dot_dimension_numbers<[1], [0], [0], [1], [0, 0, 1, 1], [], []>} : vector<64x13xf32>, vector<13x128xf32>, vector<64x128xf32> -> vector<64x128xf32>
    %39 = vector.extract_strided_slice %38 {offsets = [0, 0], sizes = [32, 128], strides = [1, 1]} : vector<64x128xf32> to vector<32x128xf32>
    %cst_14 = arith.constant 0.000000e+00 : f32
    %40 = vector.broadcast %cst_14 : f32 to vector<32x128xf32>
    %41 = arith.maximumf %39, %40 : vector<32x128xf32>
    %42 = vector.extract_strided_slice %38 {offsets = [32, 0], sizes = [32, 128], strides = [1, 1]} : vector<64x128xf32> to vector<32x128xf32>
    %c1_i32_15 = arith.constant 1 : i32
    %43 = tpu.dynamic_rotate %41 by %c1_i32_15 dim 1 : vector<32x128xf32>, i32 -> vector<32x128xf32>
    %cst_16 = arith.constant 0.000000e+00 : f32
    %44 = vector.shape_cast %19 : vector<1x128xi1> to vector<1x128xi1>
    %45 = vector.broadcast %44 : vector<1x128xi1> to vector<32x128xi1>
    %46 = vector.broadcast %cst_16 : f32 to vector<32x128xf32>
    %47 = arith.select %45, %46, %43 : vector<32x128xi1>, vector<32x128xf32>
    %c127_i32_17 = arith.constant 127 : i32
    %48 = tpu.dynamic_rotate %41 by %c127_i32_17 dim 1 : vector<32x128xf32>, i32 -> vector<32x128xf32>
    %cst_18 = arith.constant 0.000000e+00 : f32
    %49 = vector.shape_cast %21 : vector<1x128xi1> to vector<1x128xi1>
    %50 = vector.broadcast %49 : vector<1x128xi1> to vector<32x128xi1>
    %51 = vector.broadcast %cst_18 : f32 to vector<32x128xf32>
    %52 = arith.select %50, %51, %48 : vector<32x128xi1>, vector<32x128xf32>
    %53 = tpu.concatenate %47, %41, %52, %22 in 0 : vector<32x128xf32>, vector<32x128xf32>, vector<32x128xf32>, vector<1x128xf32> -> vector<97x128xf32>
    %cst_19 = arith.constant dense<0.000000e+00> : vector<32x128xf32>
    %54 = tpu.matmul %24, %53, %cst_19 {dimension_numbers = #tpu.dot_dimension_numbers<[1], [0], [0], [1], [0, 0, 1, 1], [], []>} : vector<32x97xf32>, vector<97x128xf32>, vector<32x128xf32> -> vector<32x128xf32>
    %55 = arith.addf %54, %42 : vector<32x128xf32>
    %cst_20 = arith.constant 0.000000e+00 : f32
    %56 = vector.broadcast %cst_20 : f32 to vector<32x128xf32>
    %57 = arith.maximumf %55, %56 : vector<32x128xf32>
    %c1_i32_21 = arith.constant 1 : i32
    %58 = tpu.dynamic_rotate %57 by %c1_i32_21 dim 1 : vector<32x128xf32>, i32 -> vector<32x128xf32>
    %cst_22 = arith.constant 0.000000e+00 : f32
    %59 = vector.shape_cast %19 : vector<1x128xi1> to vector<1x128xi1>
    %60 = vector.broadcast %59 : vector<1x128xi1> to vector<32x128xi1>
    %61 = vector.broadcast %cst_22 : f32 to vector<32x128xf32>
    %62 = arith.select %60, %61, %58 : vector<32x128xi1>, vector<32x128xf32>
    %c127_i32_23 = arith.constant 127 : i32
    %63 = tpu.dynamic_rotate %57 by %c127_i32_23 dim 1 : vector<32x128xf32>, i32 -> vector<32x128xf32>
    %cst_24 = arith.constant 0.000000e+00 : f32
    %64 = vector.shape_cast %21 : vector<1x128xi1> to vector<1x128xi1>
    %65 = vector.broadcast %64 : vector<1x128xi1> to vector<32x128xi1>
    %66 = vector.broadcast %cst_24 : f32 to vector<32x128xf32>
    %67 = arith.select %65, %66, %63 : vector<32x128xi1>, vector<32x128xf32>
    %68 = tpu.concatenate %62, %57, %67, %22 in 0 : vector<32x128xf32>, vector<32x128xf32>, vector<32x128xf32>, vector<1x128xf32> -> vector<97x128xf32>
    %cst_25 = arith.constant dense<0.000000e+00> : vector<32x128xf32>
    %69 = tpu.matmul %25, %68, %cst_25 {dimension_numbers = #tpu.dot_dimension_numbers<[1], [0], [0], [1], [0, 0, 1, 1], [], []>} : vector<32x97xf32>, vector<97x128xf32>, vector<32x128xf32> -> vector<32x128xf32>
    %cst_26 = arith.constant 0.000000e+00 : f32
    %70 = vector.broadcast %cst_26 : f32 to vector<32x128xf32>
    %71 = arith.maximumf %69, %70 : vector<32x128xf32>
    %c1_i32_27 = arith.constant 1 : i32
    %72 = tpu.dynamic_rotate %71 by %c1_i32_27 dim 1 : vector<32x128xf32>, i32 -> vector<32x128xf32>
    %cst_28 = arith.constant 0.000000e+00 : f32
    %73 = vector.shape_cast %19 : vector<1x128xi1> to vector<1x128xi1>
    %74 = vector.broadcast %73 : vector<1x128xi1> to vector<32x128xi1>
    %75 = vector.broadcast %cst_28 : f32 to vector<32x128xf32>
    %76 = arith.select %74, %75, %72 : vector<32x128xi1>, vector<32x128xf32>
    %c127_i32_29 = arith.constant 127 : i32
    %77 = tpu.dynamic_rotate %71 by %c127_i32_29 dim 1 : vector<32x128xf32>, i32 -> vector<32x128xf32>
    %cst_30 = arith.constant 0.000000e+00 : f32
    %78 = vector.shape_cast %21 : vector<1x128xi1> to vector<1x128xi1>
    %79 = vector.broadcast %78 : vector<1x128xi1> to vector<32x128xi1>
    %80 = vector.broadcast %cst_30 : f32 to vector<32x128xf32>
    %81 = arith.select %79, %80, %77 : vector<32x128xi1>, vector<32x128xf32>
    %82 = tpu.concatenate %76, %71, %81, %22 in 0 : vector<32x128xf32>, vector<32x128xf32>, vector<32x128xf32>, vector<1x128xf32> -> vector<97x128xf32>
    %cst_31 = arith.constant dense<0.000000e+00> : vector<32x128xf32>
    %83 = tpu.matmul %26, %82, %cst_31 {dimension_numbers = #tpu.dot_dimension_numbers<[1], [0], [0], [1], [0, 0, 1, 1], [], []>} : vector<32x97xf32>, vector<97x128xf32>, vector<32x128xf32> -> vector<32x128xf32>
    %84 = arith.addf %83, %57 : vector<32x128xf32>
    %cst_32 = arith.constant 0.000000e+00 : f32
    %85 = vector.broadcast %cst_32 : f32 to vector<32x128xf32>
    %86 = arith.maximumf %84, %85 : vector<32x128xf32>
    %c0_33 = arith.constant 0 : index
    %c0_34 = arith.constant 0 : index
    %87 = vector.load %arg3[%c0_33, %c0_34] : memref<32x128xf32, #tpu.memory_space<vmem>>, vector<32x128xf32>
    tpu.vector_store %arg3[%c0_33, %c0_34], %86 {strides = array<i32>} : memref<32x128xf32, #tpu.memory_space<vmem>>, vector<32x128xf32>,
    return
  }
  func.func @transform_0(%arg0: i32) -> (i32, i32) {
    %c0_i32 = arith.constant 0 : i32
    %c0_i32_0 = arith.constant 0 : i32
    return %c0_i32, %arg0 : i32, i32
  }
  func.func @transform_1(%arg0: i32) -> (i32, i32) {
    %c0_i32 = arith.constant 0 : i32
    %c0_i32_0 = arith.constant 0 : i32
    %c0_i32_1 = arith.constant 0 : i32
    return %c0_i32, %c0_i32_0 : i32, i32
  }
  func.func @transform_2(%arg0: i32) -> (i32, i32) {
    %c0_i32 = arith.constant 0 : i32
    %c0_i32_0 = arith.constant 0 : i32
    return %c0_i32, %arg0 : i32, i32
  }
}

</mosaic_0001>

<llo_original>
// kernel: tpu_custom_call.1
$region0: #{tpu_custom_call.1}
  #allocation0 [shape = 'u32[]', space=smem, size = 0x4, offset = 0x4, fixed_abs, tag = 'smem constant byte address 0x4 - core index']
  #allocation1 [shape = 'u32[144,128]{1,0:T(1,128)}', space=vmem, size = 0x12000, scoped, tag = 'internal scratch']
  %s0 = inlined_call_operand.hbm [shape: f32[4,256], index: 0, kind: input, shape index: {}]
  %s1 = inlined_call_operand.hbm [shape: f32[160,128], index: 1, kind: input, shape index: {}]
  %s2 = inlined_call_operand.hbm [shape: f32[32,256], index: 2, kind: output, shape index: {}]
  %s3 = sld [smem:[#allocation0]]
  $region49: #{tpu_custom_call.1} parent=0
    _
  %s5 = ssub.s32 1, %s3
  %s6 = scalar_select 0, %s5, %s3
  $region1: #{tpu_custom_call.1} parent=0
    #allocation2 [shape = 'u8[4096]{0}', space=vmem, size = 0x1000, scoped, tag = 'input window, operand 0']
    #allocation3 [shape = 's32[2]{0}', space=sflag, size = 0x8, scoped, tag = 'scoped memory for tpu_custom_call.1']
    #allocation4 [shape = 's32[2]{0}', space=sflag, size = 0x8, scoped, tag = 'scoped memory for tpu_custom_call.1']
    #allocation5 [shape = 'u8[81920]{0}', space=vmem, size = 0x14000, scoped, tag = 'input window, operand 1, single buffered']
    #allocation6 [shape = 's32[1]{0}', space=sflag, size = 0x4, scoped, tag = 'scoped memory for tpu_custom_call.1']
    #allocation7 [shape = 'u8[32768]{0}', space=vmem, size = 0x8000, scoped, tag = 'output window, operand 0']
    %7 = vsyncpa [#allocation3], 0
    %s8 = scalar_lea.sflag [#allocation3], 1
    %9 = vsyncpa %s8, 0
    %10 = vsyncpa [#allocation6], 0
    %11 = vsyncpa [#allocation4], 0
    %s12 = scalar_lea.sflag [#allocation4], 1
    %13 = vsyncpa %s12, 0
    loop: start=0, step=1, limit=4
    $region2: #{tpu_custom_call.1} parent=1 // loop_pre_header
      _
    $region3: #{tpu_custom_call.1} parent=1 // loop_header
      %s15 = sphi 0, %s19
      %p16 = scmp.ge.s32.totalorder %s15, 4
      %s25 = sphi 0, %s27
      %s28 = sphi 0, %s25
      %s29 = sphi 0, %s28
      %s45 = sphi 0, %s29
      %s49 = sphi 0, %s49
      %s51 = sphi 0, %s49
      %s52 = sphi 0, %s51
      %s66 = sphi 0, %s52
      %s72 = sphi 0, %s74
      %s75 = sphi 0, %s72
      %s76 = sphi 0, %s75
      %s92 = sphi 0, %s76
    $region4: #{tpu_custom_call.1} parent=1 // loop_header_branch
      %18 = sbr.rel (%p16) target = $region8
    $region5: #{tpu_custom_call.1} parent=1 // loop_body
      %s20 = ssub.s32 %s15, 1
      %s21 = ssub.s32 %s15, 2
      %s22 = sadd.s32 %s15, 1
      %s23 = ssub.s32 %s15, %s22
      %p24 = scmp.eq.s32.totalorder %s23, 0
      %s26 = sadd.s32 %s25, 1
      %s27 = scalar_select %p24, %s25, %s26
      %p30 = pneg %p24
      %p31 = scmp.eq.s32.totalorder %s15, 1
      %p32 = por %p30, %p31
      %p33 = scmp.ne.s32.totalorder %s25, %s28
      %p34 = scmp.eq.s32.totalorder %s15, 0
      %p35 = por %p33, %p34
      %p36 = scmp.ne.s32.totalorder %s25, %s28
      %p37 = scmp.eq.s32.totalorder %s20, 1
      %p38 = por %p36, %p37
      %p39 = scmp.ne.s32.totalorder %s28, %s29
      %p40 = scmp.eq.s32.totalorder %s20, 0
      %p41 = por %p39, %p40
      %p42 = scmp.ne.s32.totalorder %s28, %s29
      %p43 = scmp.eq.s32.totalorder %s21, 1
      %p44 = por %p42, %p43
      %p46 = scmp.ne.s32.totalorder %s29, %s45
      %p47 = scmp.eq.s32.totalorder %s21, 0
      %p48 = por %p46, %p47
      %s50 = sadd.s32 %s49, 1
      %p53 = scmp.eq.s32.totalorder %s15, 1
      %p54 = scmp.ne.s32.totalorder %s49, %s51
      %p55 = scmp.eq.s32.totalorder %s15, 0
      %p56 = por %p54, %p55
      %p57 = scmp.ne.s32.totalorder %s49, %s51
      %p58 = scmp.eq.s32.totalorder %s20, 1
      %p59 = por %p57, %p58
      %p60 = scmp.ne.s32.totalorder %s51, %s52
      %p61 = scmp.eq.s32.totalorder %s20, 0
      %p62 = por %p60, %p61
      %p63 = scmp.ne.s32.totalorder %s51, %s52
      %p64 = scmp.eq.s32.totalorder %s21, 1
      %p65 = por %p63, %p64
      %p67 = scmp.ne.s32.totalorder %s52, %s66
      %p68 = scmp.eq.s32.totalorder %s21, 0
      %p69 = por %p67, %p68
      %s70 = ssub.s32 %s15, %s22
      %p71 = scmp.eq.s32.totalorder %s70, 0
      %s73 = sadd.s32 %s72, 1
      %s74 = scalar_select %p71, %s72, %s73
      %p77 = pneg %p71
      %p78 = scmp.eq.s32.totalorder %s15, 1
      %p79 = por %p77, %p78
      %p80 = scmp.ne.s32.totalorder %s72, %s75
      %p81 = scmp.eq.s32.totalorder %s15, 0
      %p82 = por %p80, %p81
      %p83 = scmp.ne.s32.totalorder %s72, %s75
      %p84 = scmp.eq.s32.totalorder %s20, 1
      %p85 = por %p83, %p84
      %p86 = scmp.ne.s32.totalorder %s75, %s76
      %p87 = scmp.eq.s32.totalorder %s20, 0
      %p88 = por %p86, %p87
      %p89 = scmp.ne.s32.totalorder %s75, %s76
      %p90 = scmp.eq.s32.totalorder %s21, 1
      %p91 = por %p89, %p90
      %p93 = scmp.ne.s32.totalorder %s76, %s92
      %p94 = scmp.eq.s32.totalorder %s21, 0
      %p95 = por %p93, %p94
      %p96 = scmp.le.s32.totalorder 1, %s15
      %p97 = scmp.lt.s32.totalorder %s15, 3
      %p98 = pnand %p96, %p97
      %p99 = pneg %p98
      // Predicated region
      $region9: #{tpu_custom_call.1} parent=5 // pred_check
        _
      $region10: #{tpu_custom_call.1} parent=5 // pred_check_branch
        %101 = sbr.rel (%p98) target = $region12
      $region11: #{tpu_custom_call.1} parent=5 // pred_region
        %s102 = ssub.s32 %s15, 1
        // Predicated region
        $region13: #{tpu_custom_call.1} parent=11 // pred_check
          %p103 = pneg %p62
        $region14: #{tpu_custom_call.1} parent=11 // pred_check_branch
          %105 = sbr.rel (%p103) target = $region16
        $region15: #{tpu_custom_call.1} parent=11 // pred_region
          %s107 = ssub.s32 2560, 2560
          %108 = vsyncadd [#allocation6], %s107
          %s109 = sshll.u32 [#allocation5], 4
          %s110 = int_to_ptr.vmem [resolvable:$true] %s109
          %115 = dma.hbm_to_vmem [thread:$0]  %s1, 2560, %s110, [#allocation6], 128, 128, 8
        $region16: #{tpu_custom_call.1} parent=11 // pred_fallthru
          _
      $region12: #{tpu_custom_call.1} parent=5 // pred_fallthru
        _
      %p116 = scmp.lt.s32.totalorder %s15, 2
      // Predicated region
      $region17: #{tpu_custom_call.1} parent=5 // pred_check
        %p117 = pneg %p116
      $region18: #{tpu_custom_call.1} parent=5 // pred_check_branch
        %119 = sbr.rel (%p117) target = $region20
      $region19: #{tpu_custom_call.1} parent=5 // pred_region
        // Predicated region
        $region21: #{tpu_custom_call.1} parent=19 // pred_check
          %p120 = pneg %p35
        $region22: #{tpu_custom_call.1} parent=19 // pred_check_branch
          %122 = sbr.rel (%p120) target = $region24
        $region23: #{tpu_custom_call.1} parent=19 // pred_region
          %s123 = sand.u32 %s25, 1
          %s124 = scalar_lea.sflag [#allocation3], %s123
          %s125 = sand.u32 %s25, 1
          %s126 = smul.addr %s125, 4
          %s127 = scalar_lea.vmem [#allocation2], %s126
          %s129 = ssub.s32 64, 64
          %130 = vsyncadd %s124, %s129
          %s131 = smul.addr %s15, 64
          %s132 = scalar_lea.hbm %s0, %s131
          %s134 = sshll.u32 %s127, 4
          %s135 = int_to_ptr.vmem [resolvable:$true] %s134
          %137 = dma.hbm_to_vmem [thread:$0]  %s132, 64, %s135, %s124
        $region24: #{tpu_custom_call.1} parent=19 // pred_fallthru
          _
      $region20: #{tpu_custom_call.1} parent=5 // pred_fallthru
        _
      %p138 = scmp.le.s32.totalorder 1, %s15
      %p139 = scmp.lt.s32.totalorder %s15, 3
      %p140 = pnand %p138, %p139
      %p141 = pneg %p140
      // Predicated region
      $region25: #{tpu_custom_call.1} parent=5 // pred_check
        _
      $region26: #{tpu_custom_call.1} parent=5 // pred_check_branch
        %143 = sbr.rel (%p140) target = $region28
      $region27: #{tpu_custom_call.1} parent=5 // pred_region
        %s144 = ssub.s32 %s15, 1
        %s145 = sand.u32 %s28, 1
        %s146 = scalar_lea.sflag [#allocation3], %s145
        %s147 = sand.u32 %s28, 1
        %s148 = smul.addr %s147, 4
        %s149 = scalar_lea.vmem [#allocation2], %s148
        // Predicated region
        $region29: #{tpu_custom_call.1} parent=27 // pred_check
          %p150 = pneg %p41
        $region30: #{tpu_custom_call.1} parent=27 // pred_check_branch
          %152 = sbr.rel (%p150) target = $region32
        $region31: #{tpu_custom_call.1} parent=27 // pred_region
          %153 = dma.done %s146, 64
        $region32: #{tpu_custom_call.1} parent=27 // pred_fallthru
          _
        // Predicated region
        $region33: #{tpu_custom_call.1} parent=27 // pred_check
          %p154 = pneg %p62
        $region34: #{tpu_custom_call.1} parent=27 // pred_check_branch
          %156 = sbr.rel (%p154) target = $region36
        $region35: #{tpu_custom_call.1} parent=27 // pred_region
          %157 = dma.done [#allocation6], 2560
        $region36: #{tpu_custom_call.1} parent=27 // pred_fallthru
          _
        %s158 = sand.u32 %s28, 1
        %s159 = scalar_lea.sflag [#allocation3], %s158
        %s160 = sand.u32 %s28, 1
        %s161 = smul.addr %s160, 4
        %s162 = scalar_lea.vmem [#allocation2], %s161
        %p163 = pneg %p41
        %p164 = pneg %p38
        %p165 = pneg %p62
        %p166 = pneg %p59
        %p167 = pneg %p88
        %p168 = pneg %p85
        %s169 = sand.u32 %s75, 1
        %s170 = scalar_lea.sflag [#allocation4], %s169
        %s171 = sand.u32 %s75, 1
        %s172 = smul.addr %s171, 32
        %s173 = scalar_lea.vmem [#allocation7], %s172
        %v174 = vld [vmem:[%s149] sm:$0xf]
        %v175 = vlaneseq
        %v176 = vand.u32 %v175, 127
        %vm177 = vcmp.lt.s32.totalorder %v176, 0
        %v178 = vsub.s32 0, %v176
        %v179 = vsel %vm177, %v178, %v176
        %v180 = vshrl.u32 %v179, 4
        %v181 = vand.u32 %v179, 15
        %v182 = vsub.s32 0, %v181
        %v183 = vsel %vm177, %v182, %v181
        %vm184 = vcmp.ne.s32.totalorder %v183, 0
        %vm185 = vcmp.lt.s32.totalorder %v183, 0
        %vm186 = vmand %vm185, %vm184
        %v187 = vadd.s32 %v183, 16
        %v188 = vsel %vm186, %v187, %v183
        %vm189 = vcmp.eq.s32.totalorder %v188, 0
        %vm190 = vcmp.eq.s32.totalorder %v188, 15
        %v191 = vld [vmem:[#allocation5] sm:$0xff]
        %v192 = vld [vmem:[#allocation5 + $0x8] sm:$0xff]
        %v193 = vld [vmem:[#allocation5 + $0x10] sm:$0xff]
        %v194 = vld [vmem:[#allocation5 + $0x18] sm:$0xff]
        %v195 = vld [vmem:[#allocation5 + $0x20] sm:$0xff]
        %v196 = vld [vmem:[#allocation5 + $0x28] sm:$0xff]
        %v197 = vld [vmem:[#allocation5 + $0x30] sm:$0xff]
        %v198 = vld [vmem:[#allocation5 + $0x38] sm:$0xff]
        %v199 = vld [vmem:[#allocation5 + $0x40] sm:$0xff]
        %v200 = vld [vmem:[#allocation5 + $0x48] sm:$0xff]
        %v201 = vld [vmem:[#allocation5 + $0x50] sm:$0xff]
        %v202 = vld [vmem:[#allocation5 + $0x58] sm:$0xff]
        %v203 = vld [vmem:[#allocation5 + $0x60] sm:$0xff]
        %v204 = vld [vmem:[#allocation5 + $0x68] sm:$0xff]
        %v205 = vld [vmem:[#allocation5 + $0x70] sm:$0xff]
        %v206 = vld [vmem:[#allocation5 + $0x78] sm:$0xff]
        %v207 = vld [vmem:[#allocation5 + $0x80] sm:$0xff]
        %v208 = vld [vmem:[#allocation5 + $0x88] sm:$0xff]
        %v209 = vld [vmem:[#allocation5 + $0x90] sm:$0xff]
        %v210 = vld [vmem:[#allocation5 + $0x98] sm:$0xff]
        %211 = vrot.lane.b32.xlu0 %v174, 1
        %v212 = vpop.permute.xlu0 %211
        %v213 = vsel %vm189, 1, 0
        %vm214 = vcmp.eq.s32.totalorder %v213, 1
        %v215 = vsel %vm214, 0.0, %v212
        %216 = vrot.lane.b32.xlu0 %v174, 127
        %v217 = vpop.permute.xlu0 %216
        %v218 = vsel %vm190, 1, 0
        %vm219 = vcmp.eq.s32.totalorder %v218, 1
        %v220 = vsel %vm219, 0.0, %v217
        %v222 = vrot.slane %v174, 4
        %vm224 = vcmask 1043456
        %v225 = vsel %vm224, %v215, %v222
        %v226 = vsel %vm224, %v220, 1.0
        %vm227 = vcmask 105472
        %v229 = vsel %vm227, %v191, 0
        %v232 = vsel %vm227, %v192, 0
        %v235 = vsel %vm227, %v193, 0
        %v238 = vsel %vm227, %v194, 0
        %v241 = vsel %vm227, %v195, 0
        %v244 = vsel %vm227, %v196, 0
        %v247 = vsel %vm227, %v197, 0
        %v250 = vsel %vm227, %v198, 0
        %vm252 = vcmask 1044480
        %v254 = vsel %vm252, %v226, 0
        %256 = vmatprep.subr.mxu0 0.0
        %257 = vmatpush1.msra.mxu0 %v225
        %258 = vmatprep.subr.mxu0 0.0
        %259 = vmatpush1.msra.mxu0 %v254
        %260 = vmatprep.subr.mxu0 0.0
        %261 = vmatpush1.msra.mxu0 0.0
        %262 = vmatprep.subr.mxu0 0.0
        %263 = vmatpush1.msra.mxu0 0.0
        %264 = vmatprep.subr.mxu0 0.0
        %265 = vmatpush1.msra.mxu0 0.0
        %266 = vmatprep.subr.mxu0 0.0
        %267 = vmatpush1.msra.mxu0 0.0
        %268 = vmatprep.subr.mxu0 0.0
        %269 = vmatpush1.msra.mxu0 0.0
        %270 = vmatprep.subr.mxu0 0.0
        %271 = vmatpush1.msra.mxu0 0.0
        %272 = vmatprep.subr.mxu0 0.0
        %273 = vmatpush1.msra.mxu0 0.0
        %274 = vmatprep.subr.mxu0 0.0
        %275 = vmatpush1.msra.mxu0 0.0
        %276 = vmatprep.subr.mxu0 0.0
        %277 = vmatpush1.msra.mxu0 0.0
        %278 = vmatprep.subr.mxu0 0.0
        %279 = vmatpush1.msra.mxu0 0.0
        %280 = vmatprep.subr.mxu0 0.0
        %281 = vmatpush1.msra.mxu0 0.0
        %282 = vmatprep.subr.mxu0 0.0
        %283 = vmatpush1.msra.mxu0 0.0
        %284 = vmatprep.subr.mxu0 0.0
        %285 = vmatpush1.msra.mxu0 0.0
        %286 = vmatprep.subr.mxu0 0.0
        %287 = vmatpush1.msra.mxu0 0.0
        %288 = vmatprep.subr.mxu0 0.0
        %289 = vmatpush1.msra.mxu0 0.0
        %290 = vmatprep.subr.mxu0 0.0
        %291 = vmatpush1.msra.mxu0 0.0
        %292 = vmatprep.subr.mxu0 0.0
        %293 = vmatpush1.msra.mxu0 0.0
        %294 = vmatprep.subr.mxu0 0.0
        %295 = vmatpush1.msra.mxu0 0.0
        %296 = vmatprep.subr.mxu0 0.0
        %297 = vmatpush1.msra.mxu0 0.0
        %298 = vmatprep.subr.mxu0 0.0
        %299 = vmatpush1.msra.mxu0 0.0
        %300 = vmatprep.subr.mxu0 0.0
        %301 = vmatpush1.msra.mxu0 0.0
        %302 = vmatprep.subr.mxu0 0.0
        %303 = vmatpush1.msra.mxu0 0.0
        %304 = vmatprep.subr.mxu0 0.0
        %305 = vmatpush1.msra.mxu0 0.0
        %306 = vmatprep.subr.mxu0 0.0
        %307 = vmatpush1.msra.mxu0 0.0
        %308 = vmatprep.subr.mxu0 0.0
        %309 = vmatpush1.msra.mxu0 0.0
        %310 = vmatprep.subr.mxu0 0.0
        %311 = vmatpush1.msra.mxu0 0.0
        %312 = vmatprep.subr.mxu0 0.0
        %313 = vmatpush1.msra.mxu0 0.0
        %314 = vmatprep.subr.mxu0 0.0
        %315 = vmatpush1.msra.mxu0 0.0
        %316 = vmatprep.subr.mxu0 0.0
        %317 = vmatpush1.msra.mxu0 0.0
        %318 = vmatprep.subr.mxu0 0.0
        %319 = vmatpush1.msra.mxu0 0.0
        %320 = vmatprep.mubr.f32.mxu0 0.0
        %321 = vmatmul.mubr.f32.gmra.mrb[0].mxu0 %v229
        %v322 = vpop.f32.mrb[0].mxu0
        %v323 = vadd.f32 0.0, %v322
        %v324 = vpop.f32.mrb[0].mxu0
        %325 = vmatprep.mubr.f32.mxu0 0.0
        %326 = vmatmul.mubr.f32.gmra.mrb[0].mxu0 %v232
        %v327 = vpop.f32.mrb[0].mxu0
        %v328 = vadd.f32 0.0, %v327
        %v329 = vpop.f32.mrb[0].mxu0
        %330 = vmatprep.mubr.f32.mxu0 0.0
        %331 = vmatmul.mubr.f32.gmra.mrb[0].mxu0 %v235
        %v332 = vpop.f32.mrb[0].mxu0
        %v333 = vadd.f32 0.0, %v332
        %v334 = vpop.f32.mrb[0].mxu0
        %335 = vmatprep.mubr.f32.mxu0 0.0
        %336 = vmatmul.mubr.f32.gmra.mrb[0].mxu0 %v238
        %v337 = vpop.f32.mrb[0].mxu0
        %v338 = vadd.f32 0.0, %v337
        %v339 = vpop.f32.mrb[0].mxu0
        %340 = vmatprep.mubr.f32.mxu0 0.0
        %341 = vmatmul.mubr.f32.gmra.mrb[0].mxu0 %v241
        %v342 = vpop.f32.mrb[0].mxu0
        %v343 = vadd.f32 0.0, %v342
        %v344 = vpop.f32.mrb[0].mxu0
        %345 = vmatprep.mubr.f32.mxu0 0.0
        %346 = vmatmul.mubr.f32.gmra.mrb[0].mxu0 %v244
        %v347 = vpop.f32.mrb[0].mxu0
        %v348 = vadd.f32 0.0, %v347
        %v349 = vpop.f32.mrb[0].mxu0
        %350 = vmatprep.mubr.f32.mxu0 0.0
        %351 = vmatmul.mubr.f32.gmra.mrb[0].mxu0 %v247
        %v352 = vpop.f32.mrb[0].mxu0
        %v353 = vadd.f32 0.0, %v352
        %v354 = vpop.f32.mrb[0].mxu0
        %355 = vmatprep.mubr.f32.mxu0 0.0
        %356 = vmatmul.mubr.f32.gmra.mrb[0].mxu0 %v250
        %v357 = vpop.f32.mrb[0].mxu0
        %v358 = vadd.f32 0.0, %v357
        %v359 = vpop.f32.mrb[0].mxu0
        %360 = vdwg.mxu0
        %v361 = vmax.f32 %v323, 0.0
        %v362 = vmax.f32 %v328, 0.0
        %v363 = vmax.f32 %v333, 0.0
        %v364 = vmax.f32 %v338, 0.0
        %365 = vrot.lane.b32.xlu0 %v361, 1
        %v366 = vpop.permute.xlu0 %365
        %367 = vrot.lane.b32.xlu0 %v362, 1
        %v368 = vpop.permute.xlu0 %367
        %369 = vrot.lane.b32.xlu0 %v363, 1
        %v370 = vpop.permute.xlu0 %369
        %371 = vrot.lane.b32.xlu0 %v364, 1
        %v372 = vpop.permute.xlu0 %371
        %v373 = vsel %vm214, 0.0, %v366
        %v374 = vsel %vm214, 0.0, %v368
        %v375 = vsel %vm214, 0.0, %v370
        %v376 = vsel %vm214, 0.0, %v372
        %377 = vrot.lane.b32.xlu0 %v361, 127
        %v378 = vpop.permute.xlu0 %377
        %379 = vrot.lane.b32.xlu0 %v362, 127
        %v380 = vpop.permute.xlu0 %379
        %381 = vrot.lane.b32.xlu0 %v363, 127
        %v382 = vpop.permute.xlu0 %381
        %383 = vrot.lane.b32.xlu0 %v364, 127
        %v384 = vpop.permute.xlu0 %383
        %v385 = vsel %vm219, 0.0, %v378
        %v386 = vsel %vm219, 0.0, %v380
        %v387 = vsel %vm219, 0.0, %v382
        %v388 = vsel %vm219, 0.0, %v384
        %vm389 = vcmask 793600
        %v391 = vsel %vm389, %v199, 0
        %v394 = vsel %vm389, %v200, 0
        %v397 = vsel %vm389, %v201, 0
        %v400 = vsel %vm389, %v202, 0
        %vm402 = vcmask 1040384
        %v404 = vsel %vm402, 1.0, 0
        %406 = vmatprep.subr.mxu0 0.0
        %407 = vmatpush1.msra.mxu0 %v373
        %408 = vmatprep.subr.mxu0 0.0
        %409 = vmatpush1.msra.mxu0 %v374
        %410 = vmatprep.subr.mxu0 0.0
        %411 = vmatpush1.msra.mxu0 %v375
        %412 = vmatprep.subr.mxu0 0.0
        %413 = vmatpush1.msra.mxu0 %v376
        %414 = vmatprep.subr.mxu0 0.0
        %415 = vmatpush1.msra.mxu0 %v361
        %416 = vmatprep.subr.mxu0 0.0
        %417 = vmatpush1.msra.mxu0 %v362
        %418 = vmatprep.subr.mxu0 0.0
        %419 = vmatpush1.msra.mxu0 %v363
        %420 = vmatprep.subr.mxu0 0.0
        %421 = vmatpush1.msra.mxu0 %v364
        %422 = vmatprep.subr.mxu0 0.0
        %423 = vmatpush1.msra.mxu0 %v385
        %424 = vmatprep.subr.mxu0 0.0
        %425 = vmatpush1.msra.mxu0 %v386
        %426 = vmatprep.subr.mxu0 0.0
        %427 = vmatpush1.msra.mxu0 %v387
        %428 = vmatprep.subr.mxu0 0.0
        %429 = vmatpush1.msra.mxu0 %v388
        %430 = vmatprep.subr.mxu0 0.0
        %431 = vmatpush1.msra.mxu0 %v404
        %432 = vmatprep.subr.mxu0 0.0
        %433 = vmatpush1.msra.mxu0 0.0
        %434 = vmatprep.subr.mxu0 0.0
        %435 = vmatpush1.msra.mxu0 0.0
        %436 = vmatprep.subr.mxu0 0.0
        %437 = vmatpush1.msra.mxu0 0.0
        %438 = vmatprep.subr.mxu0 0.0
        %439 = vmatpush1.msra.mxu0 0.0
        %440 = vmatprep.subr.mxu0 0.0
        %441 = vmatpush1.msra.mxu0 0.0
        %442 = vmatprep.subr.mxu0 0.0
        %443 = vmatpush1.msra.mxu0 0.0
        %444 = vmatprep.subr.mxu0 0.0
        %445 = vmatpush1.msra.mxu0 0.0
        %446 = vmatprep.subr.mxu0 0.0
        %447 = vmatpush1.msra.mxu0 0.0
        %448 = vmatprep.subr.mxu0 0.0
        %449 = vmatpush1.msra.mxu0 0.0
        %450 = vmatprep.subr.mxu0 0.0
        %451 = vmatpush1.msra.mxu0 0.0
        %452 = vmatprep.subr.mxu0 0.0
        %453 = vmatpush1.msra.mxu0 0.0
        %454 = vmatprep.subr.mxu0 0.0
        %455 = vmatpush1.msra.mxu0 0.0
        %456 = vmatprep.subr.mxu0 0.0
        %457 = vmatpush1.msra.mxu0 0.0
        %458 = vmatprep.subr.mxu0 0.0
        %459 = vmatpush1.msra.mxu0 0.0
        %460 = vmatprep.subr.mxu0 0.0
        %461 = vmatpush1.msra.mxu0 0.0
        %462 = vmatprep.subr.mxu0 0.0
        %463 = vmatpush1.msra.mxu0 0.0
        %464 = vmatprep.subr.mxu0 0.0
        %465 = vmatpush1.msra.mxu0 0.0
        %466 = vmatprep.subr.mxu0 0.0
        %467 = vmatpush1.msra.mxu0 0.0
        %468 = vmatprep.subr.mxu0 0.0
        %469 = vmatpush1.msra.mxu0 0.0
        %470 = vmatprep.mubr.f32.mxu0 0.0
        %471 = vmatmul.mubr.f32.gmra.mrb[0].mxu0 %v391
        %v472 = vpop.f32.mrb[0].mxu0
        %v473 = vadd.f32 %v343, %v472
        %v474 = vpop.f32.mrb[0].mxu0
        %475 = vmatprep.mubr.f32.mxu0 0.0
        %476 = vmatmul.mubr.f32.gmra.mrb[0].mxu0 %v394
        %v477 = vpop.f32.mrb[0].mxu0
        %v478 = vadd.f32 %v348, %v477
        %v479 = vpop.f32.mrb[0].mxu0
        %480 = vmatprep.mubr.f32.mxu0 0.0
        %481 = vmatmul.mubr.f32.gmra.mrb[0].mxu0 %v397
        %v482 = vpop.f32.mrb[0].mxu0
        %v483 = vadd.f32 %v353, %v482
        %v484 = vpop.f32.mrb[0].mxu0
        %485 = vmatprep.mubr.f32.mxu0 0.0
        %486 = vmatmul.mubr.f32.gmra.mrb[0].mxu0 %v400
        %v487 = vpop.f32.mrb[0].mxu0
        %v488 = vadd.f32 %v358, %v487
        %v489 = vpop.f32.mrb[0].mxu0
        %490 = vdwg.mxu0
        %v491 = vmax.f32 %v473, 0.0
        %v492 = vmax.f32 %v478, 0.0
        %v493 = vmax.f32 %v483, 0.0
        %v494 = vmax.f32 %v488, 0.0
        %495 = vrot.lane.b32.xlu0 %v491, 1
        %v496 = vpop.permute.xlu0 %495
        %497 = vrot.lane.b32.xlu0 %v492, 1
        %v498 = vpop.permute.xlu0 %497
        %499 = vrot.lane.b32.xlu0 %v493, 1
        %v500 = vpop.permute.xlu0 %499
        %501 = vrot.lane.b32.xlu0 %v494, 1
        %v502 = vpop.permute.xlu0 %501
        %v503 = vsel %vm214, 0.0, %v496
        %v504 = vsel %vm214, 0.0, %v498
        %v505 = vsel %vm214, 0.0, %v500
        %v506 = vsel %vm214, 0.0, %v502
        %507 = vrot.lane.b32.xlu0 %v491, 127
        %v508 = vpop.permute.xlu0 %507
        %509 = vrot.lane.b32.xlu0 %v492, 127
        %v510 = vpop.permute.xlu0 %509
        %511 = vrot.lane.b32.xlu0 %v493, 127
        %v512 = vpop.permute.xlu0 %511
        %513 = vrot.lane.b32.xlu0 %v494, 127
        %v514 = vpop.permute.xlu0 %513
        %v515 = vsel %vm219, 0.0, %v508
        %v516 = vsel %vm219, 0.0, %v510
        %v517 = vsel %vm219, 0.0, %v512
        %v518 = vsel %vm219, 0.0, %v514
        %v520 = vsel %vm389, %v203, 0
        %v523 = vsel %vm389, %v204, 0
        %v526 = vsel %vm389, %v205, 0
        %v529 = vsel %vm389, %v206, 0
        %531 = vmatprep.subr.mxu0 0.0
        %532 = vmatpush1.msra.mxu0 %v503
        %533 = vmatprep.subr.mxu0 0.0
        %534 = vmatpush1.msra.mxu0 %v504
        %535 = vmatprep.subr.mxu0 0.0
        %536 = vmatpush1.msra.mxu0 %v505
        %537 = vmatprep.subr.mxu0 0.0
        %538 = vmatpush1.msra.mxu0 %v506
        %539 = vmatprep.subr.mxu0 0.0
        %540 = vmatpush1.msra.mxu0 %v491
        %541 = vmatprep.subr.mxu0 0.0
        %542 = vmatpush1.msra.mxu0 %v492
        %543 = vmatprep.subr.mxu0 0.0
        %544 = vmatpush1.msra.mxu0 %v493
        %545 = vmatprep.subr.mxu0 0.0
        %546 = vmatpush1.msra.mxu0 %v494
        %547 = vmatprep.subr.mxu0 0.0
        %548 = vmatpush1.msra.mxu0 %v515
        %549 = vmatprep.subr.mxu0 0.0
        %550 = vmatpush1.msra.mxu0 %v516
        %551 = vmatprep.subr.mxu0 0.0
        %552 = vmatpush1.msra.mxu0 %v517
        %553 = vmatprep.subr.mxu0 0.0
        %554 = vmatpush1.msra.mxu0 %v518
        %555 = vmatprep.subr.mxu0 0.0
        %556 = vmatpush1.msra.mxu0 %v404
        %557 = vmatprep.subr.mxu0 0.0
        %558 = vmatpush1.msra.mxu0 0.0
        %559 = vmatprep.subr.mxu0 0.0
        %560 = vmatpush1.msra.mxu0 0.0
        %561 = vmatprep.subr.mxu0 0.0
        %562 = vmatpush1.msra.mxu0 0.0
        %563 = vmatprep.subr.mxu0 0.0
        %564 = vmatpush1.msra.mxu0 0.0
        %565 = vmatprep.subr.mxu0 0.0
        %566 = vmatpush1.msra.mxu0 0.0
        %567 = vmatprep.subr.mxu0 0.0
        %568 = vmatpush1.msra.mxu0 0.0
        %569 = vmatprep.subr.mxu0 0.0
        %570 = vmatpush1.msra.mxu0 0.0
        %571 = vmatprep.subr.mxu0 0.0
        %572 = vmatpush1.msra.mxu0 0.0
        %573 = vmatprep.subr.mxu0 0.0
        %574 = vmatpush1.msra.mxu0 0.0
        %575 = vmatprep.subr.mxu0 0.0
        %576 = vmatpush1.msra.mxu0 0.0
        %577 = vmatprep.subr.mxu0 0.0
        %578 = vmatpush1.msra.mxu0 0.0
        %579 = vmatprep.subr.mxu0 0.0
        %580 = vmatpush1.msra.mxu0 0.0
        %581 = vmatprep.subr.mxu0 0.0
        %582 = vmatpush1.msra.mxu0 0.0
        %583 = vmatprep.subr.mxu0 0.0
        %584 = vmatpush1.msra.mxu0 0.0
        %585 = vmatprep.subr.mxu0 0.0
        %586 = vmatpush1.msra.mxu0 0.0
        %587 = vmatprep.subr.mxu0 0.0
        %588 = vmatpush1.msra.mxu0 0.0
        %589 = vmatprep.subr.mxu0 0.0
        %590 = vmatpush1.msra.mxu0 0.0
        %591 = vmatprep.subr.mxu0 0.0
        %592 = vmatpush1.msra.mxu0 0.0
        %593 = vmatprep.subr.mxu0 0.0
        %594 = vmatpush1.msra.mxu0 0.0
        %595 = vmatprep.mubr.f32.mxu0 0.0
        %596 = vmatmul.mubr.f32.gmra.mrb[0].mxu0 %v520
        %v597 = vpop.f32.mrb[0].mxu0
        %v598 = vadd.f32 0.0, %v597
        %v599 = vpop.f32.mrb[0].mxu0
        %600 = vmatprep.mubr.f32.mxu0 0.0
        %601 = vmatmul.mubr.f32.gmra.mrb[0].mxu0 %v523
        %v602 = vpop.f32.mrb[0].mxu0
        %v603 = vadd.f32 0.0, %v602
        %v604 = vpop.f32.mrb[0].mxu0
        %605 = vmatprep.mubr.f32.mxu0 0.0
        %606 = vmatmul.mubr.f32.gmra.mrb[0].mxu0 %v526
        %v607 = vpop.f32.mrb[0].mxu0
        %v608 = vadd.f32 0.0, %v607
        %v609 = vpop.f32.mrb[0].mxu0
        %610 = vmatprep.mubr.f32.mxu0 0.0
        %611 = vmatmul.mubr.f32.gmra.mrb[0].mxu0 %v529
        %v612 = vpop.f32.mrb[0].mxu0
        %v613 = vadd.f32 0.0, %v612
        %v614 = vpop.f32.mrb[0].mxu0
        %615 = vdwg.mxu0
        %v616 = vmax.f32 %v598, 0.0
        %v617 = vmax.f32 %v603, 0.0
        %v618 = vmax.f32 %v608, 0.0
        %v619 = vmax.f32 %v613, 0.0
        %620 = vrot.lane.b32.xlu0 %v616, 1
        %v621 = vpop.permute.xlu0 %620
        %622 = vrot.lane.b32.xlu0 %v617, 1
        %v623 = vpop.permute.xlu0 %622
        %624 = vrot.lane.b32.xlu0 %v618, 1
        %v625 = vpop.permute.xlu0 %624
        %626 = vrot.lane.b32.xlu0 %v619, 1
        %v627 = vpop.permute.xlu0 %626
        %v628 = vsel %vm214, 0.0, %v621
        %v629 = vsel %vm214, 0.0, %v623
        %v630 = vsel %vm214, 0.0, %v625
        %v631 = vsel %vm214, 0.0, %v627
        %632 = vrot.lane.b32.xlu0 %v616, 127
        %v633 = vpop.permute.xlu0 %632
        %634 = vrot.lane.b32.xlu0 %v617, 127
        %v635 = vpop.permute.xlu0 %634
        %636 = vrot.lane.b32.xlu0 %v618, 127
        %v637 = vpop.permute.xlu0 %636
        %638 = vrot.lane.b32.xlu0 %v619, 127
        %v639 = vpop.permute.xlu0 %638
        %v640 = vsel %vm219, 0.0, %v633
        %v641 = vsel %vm219, 0.0, %v635
        %v642 = vsel %vm219, 0.0, %v637
        %v643 = vsel %vm219, 0.0, %v639
        %v645 = vsel %vm389, %v207, 0
        %v648 = vsel %vm389, %v208, 0
        %v651 = vsel %vm389, %v209, 0
        %v654 = vsel %vm389, %v210, 0
        %656 = vmatprep.subr.mxu0 0.0
        %657 = vmatpush1.msra.mxu0 %v628
        %658 = vmatprep.subr.mxu0 0.0
        %659 = vmatpush1.msra.mxu0 %v629
        %660 = vmatprep.subr.mxu0 0.0
        %661 = vmatpush1.msra.mxu0 %v630
        %662 = vmatprep.subr.mxu0 0.0
        %663 = vmatpush1.msra.mxu0 %v631
        %664 = vmatprep.subr.mxu0 0.0
        %665 = vmatpush1.msra.mxu0 %v616
        %666 = vmatprep.subr.mxu0 0.0
        %667 = vmatpush1.msra.mxu0 %v617
        %668 = vmatprep.subr.mxu0 0.0
        %669 = vmatpush1.msra.mxu0 %v618
        %670 = vmatprep.subr.mxu0 0.0
        %671 = vmatpush1.msra.mxu0 %v619
        %672 = vmatprep.subr.mxu0 0.0
        %673 = vmatpush1.msra.mxu0 %v640
        %674 = vmatprep.subr.mxu0 0.0
        %675 = vmatpush1.msra.mxu0 %v641
        %676 = vmatprep.subr.mxu0 0.0
        %677 = vmatpush1.msra.mxu0 %v642
        %678 = vmatprep.subr.mxu0 0.0
        %679 = vmatpush1.msra.mxu0 %v643
        %680 = vmatprep.subr.mxu0 0.0
        %681 = vmatpush1.msra.mxu0 %v404
        %682 = vmatprep.subr.mxu0 0.0
        %683 = vmatpush1.msra.mxu0 0.0
        %684 = vmatprep.subr.mxu0 0.0
        %685 = vmatpush1.msra.mxu0 0.0
        %686 = vmatprep.subr.mxu0 0.0
        %687 = vmatpush1.msra.mxu0 0.0
        %688 = vmatprep.subr.mxu0 0.0
        %689 = vmatpush1.msra.mxu0 0.0
        %690 = vmatprep.subr.mxu0 0.0
        %691 = vmatpush1.msra.mxu0 0.0
        %692 = vmatprep.subr.mxu0 0.0
        %693 = vmatpush1.msra.mxu0 0.0
        %694 = vmatprep.subr.mxu0 0.0
        %695 = vmatpush1.msra.mxu0 0.0
        %696 = vmatprep.subr.mxu0 0.0
        %697 = vmatpush1.msra.mxu0 0.0
        %698 = vmatprep.subr.mxu0 0.0
        %699 = vmatpush1.msra.mxu0 0.0
        %700 = vmatprep.subr.mxu0 0.0
        %701 = vmatpush1.msra.mxu0 0.0
        %702 = vmatprep.subr.mxu0 0.0
        %703 = vmatpush1.msra.mxu0 0.0
        %704 = vmatprep.subr.mxu0 0.0
        %705 = vmatpush1.msra.mxu0 0.0
        %706 = vmatprep.subr.mxu0 0.0
        %707 = vmatpush1.msra.mxu0 0.0
        %708 = vmatprep.subr.mxu0 0.0
        %709 = vmatpush1.msra.mxu0 0.0
        %710 = vmatprep.subr.mxu0 0.0
        %711 = vmatpush1.msra.mxu0 0.0
        %712 = vmatprep.subr.mxu0 0.0
        %713 = vmatpush1.msra.mxu0 0.0
        %714 = vmatprep.subr.mxu0 0.0
        %715 = vmatpush1.msra.mxu0 0.0
        %716 = vmatprep.subr.mxu0 0.0
        %717 = vmatpush1.msra.mxu0 0.0
        %718 = vmatprep.subr.mxu0 0.0
        %719 = vmatpush1.msra.mxu0 0.0
        %720 = vmatprep.mubr.f32.mxu0 0.0
        %721 = vmatmul.mubr.f32.gmra.mrb[0].mxu0 %v645
        %v722 = vpop.f32.mrb[0].mxu0
        %v723 = vadd.f32 %v491, %v722
        %v724 = vpop.f32.mrb[0].mxu0
        %725 = vmatprep.mubr.f32.mxu0 0.0
        %726 = vmatmul.mubr.f32.gmra.mrb[0].mxu0 %v648
        %v727 = vpop.f32.mrb[0].mxu0
        %v728 = vadd.f32 %v492, %v727
        %v729 = vpop.f32.mrb[0].mxu0
        %730 = vmatprep.mubr.f32.mxu0 0.0
        %731 = vmatmul.mubr.f32.gmra.mrb[0].mxu0 %v651
        %v732 = vpop.f32.mrb[0].mxu0
        %v733 = vadd.f32 %v493, %v732
        %v734 = vpop.f32.mrb[0].mxu0
        %735 = vmatprep.mubr.f32.mxu0 0.0
        %736 = vmatmul.mubr.f32.gmra.mrb[0].mxu0 %v654
        %v737 = vpop.f32.mrb[0].mxu0
        %v738 = vadd.f32 %v494, %v737
        %v739 = vpop.f32.mrb[0].mxu0
        %740 = vdwg.mxu0
        %v741 = vmax.f32 %v723, 0.0
        %v742 = vmax.f32 %v728, 0.0
        %v743 = vmax.f32 %v733, 0.0
        %v744 = vmax.f32 %v738, 0.0
        %745 = vst [vmem:[%s173] sm:$0xff] %v741
        %746 = vst [vmem:[%s173 + $0x8] sm:$0xff] %v742
        %747 = vst [vmem:[%s173 + $0x10] sm:$0xff] %v743
        %748 = vst [vmem:[%s173 + $0x18] sm:$0xff] %v744
        %s749 = sand.u32 %s75, 1
        %s750 = scalar_lea.sflag [#allocation4], %s749
        %s751 = sand.u32 %s75, 1
        %s752 = smul.addr %s751, 32
        %s753 = scalar_lea.vmem [#allocation7], %s752
        // Predicated region
        $region37: #{tpu_custom_call.1} parent=27 // pred_check
          %p754 = pneg %p85
        $region38: #{tpu_custom_call.1} parent=27 // pred_check_branch
          %756 = sbr.rel (%p754) target = $region40
        $region39: #{tpu_custom_call.1} parent=27 // pred_region
          %s758 = ssub.s32 512, 512
          %759 = vsyncadd %s750, %s758
          %s760 = smul.addr %s20, 128
          %s761 = scalar_lea.hbm %s2, %s760
          %s762 = sshll.u32 %s753, 4
          %s763 = int_to_ptr.vmem [resolvable:$true] %s762
          %768 = dma.vmem_to_hbm [thread:$0]  %s763, 512, %s761, %s750, 128, 256, 8
        $region40: #{tpu_custom_call.1} parent=27 // pred_fallthru
          _
      $region28: #{tpu_custom_call.1} parent=5 // pred_fallthru
        _
      %p769 = scmp.le.s32.totalorder 2, %s15
      // Predicated region
      $region41: #{tpu_custom_call.1} parent=5 // pred_check
        %p770 = pneg %p769
      $region42: #{tpu_custom_call.1} parent=5 // pred_check_branch
        %772 = sbr.rel (%p770) target = $region44
      $region43: #{tpu_custom_call.1} parent=5 // pred_region
        %s773 = ssub.s32 %s15, 2
        // Predicated region
        $region45: #{tpu_custom_call.1} parent=43 // pred_check
          %p774 = pneg %p91
        $region46: #{tpu_custom_call.1} parent=43 // pred_check_branch
          %776 = sbr.rel (%p774) target = $region48
        $region47: #{tpu_custom_call.1} parent=43 // pred_region
          %s777 = sand.u32 %s76, 1
          %s778 = scalar_lea.sflag [#allocation4], %s777
          %s779 = sand.u32 %s76, 1
          %s780 = smul.addr %s779, 32
          %s781 = scalar_lea.vmem [#allocation7], %s780
          %782 = dma.done %s778, 512
        $region48: #{tpu_custom_call.1} parent=43 // pred_fallthru
          _
      $region44: #{tpu_custom_call.1} parent=5 // pred_fallthru
        _
    $region6: #{tpu_custom_call.1} parent=1 // loop_footer
      %s19 = sadd.s32 1, %s15
    $region7: #{tpu_custom_call.1} parent=1 // loop_footer_branch
      %14 = sbr.rel target = $region3
    $region8: #{tpu_custom_call.1} parent=1 // loop_exit
      _
    %783 = vsyncpa [#allocation3], 1
    %s784 = scalar_lea.sflag [#allocation3], 1
    %785 = vsyncpa %s784, 1
    %786 = vsyncpa [#allocation6], 1
    %787 = vsyncpa [#allocation4], 1
    %s788 = scalar_lea.sflag [#allocation4], 1
    %789 = vsyncpa %s788, 1

</llo_original>
